<compile_context>
chip_gen: v7x
topology: tpu7x:2x2x1
jax: 0.10.0
libtpu: 0.0.40
codegen_flags: <defaults>
</compile_context>

<pallas_src>
import jax
import jax.numpy as jnp
from jax.experimental import pallas as pl
from jax.experimental.pallas import tpu as pltpu


def _relu(x):
    return jnp.maximum(x, 0.0)


def _round_up(x, m):
    return (x + m - 1) // m * m


def _resident_spec(shape):
    """Full-array block, constant block index -> fetched once, VMEM-resident."""
    zeros = (0,) * len(shape)
    return pl.BlockSpec(shape, lambda i: zeros)


def _make_kernel(num_mid, vec_size):
    def kernel(emb_ref, vec_ref,
               b_enc_in_ref, w_enc_out_ref, b_enc_out_ref,
               w_cls_h_ref, w_cls_v_ref, b_cls_in_ref,
               *rest):
        # rest = [w_mid_0, b_mid_0, ..., w_mid_{m-1}, b_mid_{m-1},
        #         w_cls_out (H,1), b_cls_out (SMEM scalar), out_ref]
        mid_refs = rest[:2 * num_mid]
        w_out_ref, b_out_ref, out_ref = rest[2 * num_mid:]

        f32 = jnp.float32
        mm = w_enc_out_ref.dtype                    # bf16 matmul operand dtype

        def dense(w_ref, x_bf16, b_ref):
            # (out,in) @ (in,T) on the MXU, f32 accumulation, per-row bias
            # broadcast along lanes (the batch axis).
            return jnp.dot(w_ref[...], x_bf16,
                           preferred_element_type=f32) + b_ref[...]

        # --- encoder in_layer: its matmul was folded into the embedding tables
        # in the wrapper, so the streamed activation already equals W_in @ e.
        v = emb_ref[...] + b_enc_in_ref[...]                              # (H,T) f32

        # --- encoder out_layer ---
        enc = dense(w_enc_out_ref, _relu(v).astype(mm), b_enc_out_ref)    # (H,T)

        # --- classifier in_layer: H-wide part on the MXU, tiny V-wide part as
        # V f32 VPU FMAs (keeps vec features in f32, drops the K=V MXU pass).
        v = dense(w_cls_h_ref, enc.astype(mm), b_cls_in_ref)              # (H,T)
        vec = vec_ref[...]                                                # (V,T) f32
        for j in range(vec_size):
            v = v + w_cls_v_ref[:, j:j + 1] * vec[j:j + 1, :]

        # --- classifier middle layers (statically unrolled) ---
        for i in range(num_mid):
            v = dense(mid_refs[2 * i], _relu(v).astype(mm),
                      mid_refs[2 * i + 1])                                # (H,T)

        # --- classifier out_layer Linear(H, 1): VPU multiply by the weight
        # column + sublane (XLU) reduction -> lane-dense (1, T) score row.
        s = jnp.sum(_relu(v) * w_out_ref[...], axis=0, keepdims=True)     # (1,T)
        out_ref[...] = s + b_out_ref[0]                    # scalar bias from SMEM

    return kernel


def polyarg_q_forward(word_features_batch, vec_features_batch, params,
                      *, hidden_size, num_layers,
                      max_tile_b=2048, matmul_dtype=jnp.bfloat16):
    """word_features_batch: int32 (B, n_word_features)
       vec_features_batch : float32 (B, vec_features_size)
       returns float32 (B,)"""
    f32 = jnp.float32
    B, V = vec_features_batch.shape
    n_wf = word_features_batch.shape[1]
    H = hidden_size
    num_mid = num_layers - 1

    # --- batch tiling: lane-dense tiles (multiple of 128), large by default;
    # force >= 2 grid steps when possible so ("parallel",) can shard the grid
    # across both v7x TensorCores (harmless on single-TC v5e/v6e).
    b_pad128 = _round_up(max(B, 1), 128)
    tile_b = min(max_tile_b, b_pad128)
    if b_pad128 >= 256:
        tile_b = min(tile_b, _round_up(b_pad128 // 2, 128))
    b_pad = _round_up(B, tile_b)
    num_tiles = b_pad // tile_b

    # --- pad only the SMALL per-example inputs (never the large streams).
    if b_pad != B:
        word_features_batch = jnp.pad(word_features_batch,
                                      ((0, b_pad - B), (0, 0)))
        vec_features_batch = jnp.pad(vec_features_batch,
                                     ((0, b_pad - B), (0, 0)))

    # --- algorithmic fold of the encoder in_layer into the embedding tables:
    #       P_i = W_in[:, i*H:(i+1)*H] @ E_i.T         (H, vocab_i)   (tiny)
    #       W_in @ concat_i(E_i[idx_i]).T = sum_i P_i[:, idx_i]
    # The streamed activation shrinks from (n_wf*H, B) to (H, B) and the
    # largest-K matmul disappears from the kernel.  Gathering from the folded,
    # already-transposed tables writes the (H, b_pad) stream directly.
    # TODO(synk): move this gather in-kernel via PrefetchScalarGridSpec
    # (indices in SMEM, folded tables VMEM-resident) to drop the remaining
    # (H, B) HBM round trip entirely.
    w_enc_in = params["w_enc_in"].astype(f32)
    hi = jax.lax.Precision.HIGHEST
    emb_fold = jnp.zeros((H, b_pad), f32)
    for i in range(n_wf):
        p_i = jnp.dot(w_enc_in[:, i * H:(i + 1) * H],
                      params["embeddings"][i].astype(f32).T,
                      precision=hi)                                # (H, vocab_i)
        emb_fold = emb_fold + jnp.take(p_i, word_features_batch[:, i], axis=1)
    emb_t = emb_fold.astype(matmul_dtype)                          # (H, b_pad)
    vec_t = vec_features_batch.T.astype(f32)                       # (V, b_pad) f32

    # --- weights/biases held VMEM-resident across all grid steps.
    resident = []                                    # (array, spec) pairs

    def add_resident(arr):
        resident.append((arr, _resident_spec(arr.shape)))

    add_resident(params["b_enc_in"].astype(f32))                   # (H, 1)
    add_resident(params["w_enc_out"].astype(matmul_dtype))         # (H, H)
    add_resident(params["b_enc_out"].astype(f32))                  # (H, 1)
    add_resident(params["w_cls_h"].astype(matmul_dtype))           # (H, H)
    add_resident(params["w_cls_v"].astype(f32))                    # (H, V) f32 (VPU)
    add_resident(params["b_cls_in"].astype(f32))                   # (H, 1)
    for i in range(num_mid):
        add_resident(params["w_mid"][i].astype(matmul_dtype))      # (H, H)
        add_resident(params["b_mid"][i].astype(f32))               # (H, 1)
    add_resident(params["w_cls_out"].reshape(H, 1).astype(f32))    # (H, 1) column

    b_cls_out = params["b_cls_out"].reshape((1,)).astype(f32)      # scalar -> SMEM

    in_specs = (
        [pl.BlockSpec((H, tile_b), lambda i: (0, i)),              # folded emb stream
         pl.BlockSpec((V, tile_b), lambda i: (0, i))]              # vec stream (f32)
        + [spec for _, spec in resident]
        + [pl.BlockSpec(memory_space=pltpu.MemorySpace.SMEM)]      # scalar out bias
    )
    out_spec = pl.BlockSpec((1, tile_b), lambda i: (0, i))         # lane-dense scores

    # --- explicit VMEM budget (review #7): double-buffered streams + (assumed
    # double-buffered) resident weights + headroom for f32 temporaries; keeps
    # large tiles legal even on v7x's smaller VMEM.
    stream_bytes = 2 * tile_b * (emb_t.dtype.itemsize * H + 4 * V + 4)
    weight_bytes = 2 * sum(int(a.size) * a.dtype.itemsize for a, _ in resident)
    scratch_bytes = 8 * H * tile_b * 4
    vmem_limit = int(min(max(stream_bytes + weight_bytes + scratch_bytes,
                             32 << 20), 112 << 20))

    out = pl.pallas_call(
        _make_kernel(num_mid, V),
        out_shape=jax.ShapeDtypeStruct((1, b_pad), f32),
        grid=(num_tiles,),
        in_specs=in_specs,
        out_specs=out_spec,
        compiler_params=pltpu.CompilerParams(
            dimension_semantics=("parallel",),
            vmem_limit_bytes=vmem_limit),
    )(emb_t, vec_t, *[a for a, _ in resident], b_cls_out)

    return out.reshape(-1)[:B]


def init_params(key, word_feature_sizes, vec_features_size,
                hidden_size, num_layers):
    """Deterministic synthetic init. Linear weights in PyTorch layout
    (out_features, in_features); biases stored as (out_features, 1) columns."""
    H = hidden_size
    V = vec_features_size
    n_wf = len(word_feature_sizes)
    num_mid = num_layers - 1
    keys = jax.random.split(key, n_wf + num_mid + 8)
    k = iter(keys)

    def lin(key_w, fan_in, fan_out):
        s = 1.0 / jnp.sqrt(jnp.float32(fan_in))
        kw, kb = jax.random.split(key_w)
        w = jax.random.uniform(kw, (fan_out, fan_in), jnp.float32, -s, s)
        b = jax.random.uniform(kb, (fan_out, 1), jnp.float32, -s, s)
        return w, b

    embeddings = [jax.random.normal(next(k), (vs, H), jnp.float32)
                  for vs in word_feature_sizes]

    w_enc_in, b_enc_in = lin(next(k), n_wf * H, H)      # encoder in_layer
    w_enc_out, b_enc_out = lin(next(k), H, H)           # encoder out_layer

    # classifier in_layer: Linear(H + V -> H), split along its input axis
    w_cls_in, b_cls_in = lin(next(k), H + V, H)
    w_cls_h = w_cls_in[:, :H]                            # (H, H)
    w_cls_v = w_cls_in[:, H:]                            # (H, V)

    w_mid, b_mid = [], []
    for _ in range(num_mid):
        w, b = lin(next(k), H, H)
        w_mid.append(w)
        b_mid.append(b)

    w_cls_out, b_cls_out = lin(next(k), H, 1)            # (1, H), (1, 1)

    return dict(embeddings=embeddings,
                w_enc_in=w_enc_in, b_enc_in=b_enc_in,
                w_enc_out=w_enc_out, b_enc_out=b_enc_out,
                w_cls_h=w_cls_h, w_cls_v=w_cls_v, b_cls_in=b_cls_in,
                w_mid=w_mid, b_mid=b_mid,
                w_cls_out=w_cls_out, b_cls_out=b_cls_out)


def reference_forward(word_features_batch, vec_features_batch, params,
                      *, num_layers):
    """Pure-JAX f32 reference mirroring the PyTorch forward (x @ W.T + b)."""
    n_wf = word_features_batch.shape[1]
    relu = lambda x: jnp.maximum(x, 0.0)
    e = jnp.concatenate(
        [params["embeddings"][i][word_features_batch[:, i]]
         for i in range(n_wf)], axis=1)                           # (B, n_wf*H)
    v = e @ params["w_enc_in"].T + params["b_enc_in"].T
    enc = relu(v) @ params["w_enc_out"].T + params["b_enc_out"].T
    feats = jnp.concatenate([enc, vec_features_batch], axis=1)
    w_cls_in = jnp.concatenate([params["w_cls_h"], params["w_cls_v"]], axis=1)
    v = feats @ w_cls_in.T + params["b_cls_in"].T
    for i in range(num_layers - 1):
        v = relu(v) @ params["w_mid"][i].T + params["b_mid"][i].T
    s = relu(v) @ params["w_cls_out"].T + params["b_cls_out"].T
    return s.reshape(vec_features_batch.shape[0])


if __name__ == "__main__":
    # small shapes consistent with the module's forward
    batch = 8
    hidden_size = 32
    vec_features_size = 4
    word_feature_sizes = [10, 12, 8]
    num_layers = 3

    key = jax.random.PRNGKey(0)
    k_params, k_wf, k_vf = jax.random.split(key, 3)

    params = init_params(k_params, word_feature_sizes, vec_features_size,
                         hidden_size, num_layers)

    word_features_batch = jnp.stack(
        [jax.random.randint(jax.random.fold_in(k_wf, i), (batch,), 0, vs,
                            dtype=jnp.int32)
         for i, vs in enumerate(word_feature_sizes)], axis=1)      # (B, 3)
    vec_features_batch = jax.random.normal(
        k_vf, (batch, vec_features_size), jnp.float32)             # (B, 4)

    scores = polyarg_q_forward(word_features_batch, vec_features_batch, params,
                               hidden_size=hidden_size, num_layers=num_layers)
    scores = jax.block_until_ready(scores)

    ref = reference_forward(word_features_batch, vec_features_batch, params,
                            num_layers=num_layers)
    assert scores.shape == (batch,), scores.shape
    # bf16 matmul operands (f32 accumulation) vs. a pure-f32 reference.
    assert jnp.allclose(scores, ref, atol=5e-2, rtol=5e-2), (scores, ref)

    print("KERNEL_OK")
</pallas_src>

<mosaic_0001>
module attributes {stable_mosaic.version = 11 : i64} {
  func.func @kernel(%arg0: i32, %arg1: memref<32x128xbf16, #tpu.memory_space<vmem>>, %arg2: memref<4x128xf32, #tpu.memory_space<vmem>>, %arg3: memref<32x1xf32, #tpu.memory_space<vmem>>, %arg4: memref<32x32xbf16, #tpu.memory_space<vmem>>, %arg5: memref<32x1xf32, #tpu.memory_space<vmem>>, %arg6: memref<32x32xbf16, #tpu.memory_space<vmem>>, %arg7: memref<32x4xf32, #tpu.memory_space<vmem>>, %arg8: memref<32x1xf32, #tpu.memory_space<vmem>>, %arg9: memref<32x32xbf16, #tpu.memory_space<vmem>>, %arg10: memref<32x1xf32, #tpu.memory_space<vmem>>, %arg11: memref<32x32xbf16, #tpu.memory_space<vmem>>, %arg12: memref<32x1xf32, #tpu.memory_space<vmem>>, %arg13: memref<32x1xf32, #tpu.memory_space<vmem>>, %arg14: memref<1xf32, #tpu.memory_space<smem>>, %arg15: memref<1x128xf32, #tpu.memory_space<vmem>>) attributes {dimension_semantics = [#tpu.dimension_semantics<parallel>], iteration_bounds = array<i64: 1>, scalar_prefetch = 0 : i64, scratch_operands = 0 : i64, tpu.core_type = #tpu.core_type<tc>, window_params = [{transform_indices = @transform_0, window_bounds = array<i64: 32, 128>}, {transform_indices = @transform_1, window_bounds = array<i64: 4, 128>}, {pipeline_mode = #tpu.pipeline_mode<synchronous>, transform_indices = @transform_2, window_bounds = array<i64: 32, 1>}, {pipeline_mode = #tpu.pipeline_mode<synchronous>, transform_indices = @transform_3, window_bounds = array<i64: 32, 32>}, {pipeline_mode = #tpu.pipeline_mode<synchronous>, transform_indices = @transform_4, window_bounds = array<i64: 32, 1>}, {pipeline_mode = #tpu.pipeline_mode<synchronous>, transform_indices = @transform_5, window_bounds = array<i64: 32, 32>}, {pipeline_mode = #tpu.pipeline_mode<synchronous>, transform_indices = @transform_6, window_bounds = array<i64: 32, 4>}, {pipeline_mode = #tpu.pipeline_mode<synchronous>, transform_indices = @transform_7, window_bounds = array<i64: 32, 1>}, {pipeline_mode = #tpu.pipeline_mode<synchronous>, transform_indices = @transform_8, window_bounds = array<i64: 32, 32>}, {pipeline_mode = #tpu.pipeline_mode<synchronous>, transform_indices = @transform_9, window_bounds = array<i64: 32, 1>}, {pipeline_mode = #tpu.pipeline_mode<synchronous>, transform_indices = @transform_10, window_bounds = array<i64: 32, 32>}, {pipeline_mode = #tpu.pipeline_mode<synchronous>, transform_indices = @transform_11, window_bounds = array<i64: 32, 1>}, {pipeline_mode = #tpu.pipeline_mode<synchronous>, transform_indices = @transform_12, window_bounds = array<i64: 32, 1>}, {transform_indices = @transform_13, window_bounds = array<i64: 1>}, {transform_indices = @transform_14, window_bounds = array<i64: 1, 128>}]} {
    %c0 = arith.constant 0 : index
    %c0_0 = arith.constant 0 : index
    %0 = vector.load %arg1[%c0, %c0_0] : memref<32x128xbf16, #tpu.memory_space<vmem>>, vector<32x128xbf16>
    %c0_1 = arith.constant 0 : index
    %c0_2 = arith.constant 0 : index
    %1 = vector.load %arg3[%c0_1, %c0_2] : memref<32x1xf32, #tpu.memory_space<vmem>>, vector<32x1xf32>
    %2 = arith.extf %0 : vector<32x128xbf16> to vector<32x128xf32>
    %3 = vector.broadcast %1 : vector<32x1xf32> to vector<32x128xf32>
    %4 = arith.addf %2, %3 : vector<32x128xf32>
    %cst = arith.constant 0.000000e+00 : f32
    %5 = vector.broadcast %cst : f32 to vector<32x128xf32>
    %6 = arith.maximumf %4, %5 : vector<32x128xf32>
    %7 = arith.truncf %6 : vector<32x128xf32> to vector<32x128xbf16>
    %c0_3 = arith.constant 0 : index
    %c0_4 = arith.constant 0 : index
    %8 = vector.load %arg4[%c0_3, %c0_4] : memref<32x32xbf16, #tpu.memory_space<vmem>>, vector<32x32xbf16>
    %cst_5 = arith.constant dense<0.000000e+00> : vector<32x128xf32>
    %9 = tpu.matmul %8, %7, %cst_5 {dimension_numbers = #tpu.dot_dimension_numbers<[1], [0], [0], [1], [0, 0, 1, 1], [], []>} : vector<32x32xbf16>, vector<32x128xbf16>, vector<32x128xf32> -> vector<32x128xf32>
    %c0_6 = arith.constant 0 : index
    %c0_7 = arith.constant 0 : index
    %10 = vector.load %arg5[%c0_6, %c0_7] : memref<32x1xf32, #tpu.memory_space<vmem>>, vector<32x1xf32>
    %11 = vector.broadcast %10 : vector<32x1xf32> to vector<32x128xf32>
    %12 = arith.addf %9, %11 : vector<32x128xf32>
    %13 = arith.truncf %12 : vector<32x128xf32> to vector<32x128xbf16>
    %c0_8 = arith.constant 0 : index
    %c0_9 = arith.constant 0 : index
    %14 = vector.load %arg6[%c0_8, %c0_9] : memref<32x32xbf16, #tpu.memory_space<vmem>>, vector<32x32xbf16>
    %cst_10 = arith.constant dense<0.000000e+00> : vector<32x128xf32>
    %15 = tpu.matmul %14, %13, %cst_10 {dimension_numbers = #tpu.dot_dimension_numbers<[1], [0], [0], [1], [0, 0, 1, 1], [], []>} : vector<32x32xbf16>, vector<32x128xbf16>, vector<32x128xf32> -> vector<32x128xf32>
    %c0_11 = arith.constant 0 : index
    %c0_12 = arith.constant 0 : index
    %16 = vector.load %arg8[%c0_11, %c0_12] : memref<32x1xf32, #tpu.memory_space<vmem>>, vector<32x1xf32>
    %17 = vector.broadcast %16 : vector<32x1xf32> to vector<32x128xf32>
    %18 = arith.addf %15, %17 : vector<32x128xf32>
    %c0_13 = arith.constant 0 : index
    %c0_14 = arith.constant 0 : index
    %19 = vector.load %arg2[%c0_13, %c0_14] : memref<4x128xf32, #tpu.memory_space<vmem>>, vector<4x128xf32>
    %c0_15 = arith.constant 0 : index
    %c0_16 = arith.constant 0 : index
    %20 = vector.load %arg7[%c0_15, %c0_16] : memref<32x4xf32, #tpu.memory_space<vmem>>, vector<32x1xf32>
    %21 = vector.extract_strided_slice %19 {offsets = [0, 0], sizes = [1, 128], strides = [1, 1]} : vector<4x128xf32> to vector<1x128xf32>
    %22 = vector.broadcast %20 : vector<32x1xf32> to vector<32x128xf32>
    %23 = vector.broadcast %21 : vector<1x128xf32> to vector<32x128xf32>
    %24 = arith.mulf %22, %23 : vector<32x128xf32>
    %25 = arith.addf %18, %24 : vector<32x128xf32>
    %c0_17 = arith.constant 0 : index
    %c1 = arith.constant 1 : index
    %26 = vector.load %arg7[%c0_17, %c1] : memref<32x4xf32, #tpu.memory_space<vmem>>, vector<32x1xf32>
    %27 = vector.extract_strided_slice %19 {offsets = [1, 0], sizes = [1, 128], strides = [1, 1]} : vector<4x128xf32> to vector<1x128xf32>
    %28 = vector.broadcast %26 : vector<32x1xf32> to vector<32x128xf32>
    %29 = vector.broadcast %27 : vector<1x128xf32> to vector<32x128xf32>
    %30 = arith.mulf %28, %29 : vector<32x128xf32>
    %31 = arith.addf %25, %30 : vector<32x128xf32>
    %c0_18 = arith.constant 0 : index
    %c2 = arith.constant 2 : index
    %32 = vector.load %arg7[%c0_18, %c2] : memref<32x4xf32, #tpu.memory_space<vmem>>, vector<32x1xf32>
    %33 = vector.extract_strided_slice %19 {offsets = [2, 0], sizes = [1, 128], strides = [1, 1]} : vector<4x128xf32> to vector<1x128xf32>
    %34 = vector.broadcast %32 : vector<32x1xf32> to vector<32x128xf32>
    %35 = vector.broadcast %33 : vector<1x128xf32> to vector<32x128xf32>
    %36 = arith.mulf %34, %35 : vector<32x128xf32>
    %37 = arith.addf %31, %36 : vector<32x128xf32>
    %c0_19 = arith.constant 0 : index
    %c3 = arith.constant 3 : index
    %38 = vector.load %arg7[%c0_19, %c3] : memref<32x4xf32, #tpu.memory_space<vmem>>, vector<32x1xf32>
    %39 = vector.extract_strided_slice %19 {offsets = [3, 0], sizes = [1, 128], strides = [1, 1]} : vector<4x128xf32> to vector<1x128xf32>
    %40 = vector.broadcast %38 : vector<32x1xf32> to vector<32x128xf32>
    %41 = vector.broadcast %39 : vector<1x128xf32> to vector<32x128xf32>
    %42 = arith.mulf %40, %41 : vector<32x128xf32>
    %43 = arith.addf %37, %42 : vector<32x128xf32>
    %cst_20 = arith.constant 0.000000e+00 : f32
    %44 = vector.broadcast %cst_20 : f32 to vector<32x128xf32>
    %45 = arith.maximumf %43, %44 : vector<32x128xf32>
    %46 = arith.truncf %45 : vector<32x128xf32> to vector<32x128xbf16>
    %c0_21 = arith.constant 0 : index
    %c0_22 = arith.constant 0 : index
    %47 = vector.load %arg9[%c0_21, %c0_22] : memref<32x32xbf16, #tpu.memory_space<vmem>>, vector<32x32xbf16>
    %cst_23 = arith.constant dense<0.000000e+00> : vector<32x128xf32>
    %48 = tpu.matmul %47, %46, %cst_23 {dimension_numbers = #tpu.dot_dimension_numbers<[1], [0], [0], [1], [0, 0, 1, 1], [], []>} : vector<32x32xbf16>, vector<32x128xbf16>, vector<32x128xf32> -> vector<32x128xf32>
    %c0_24 = arith.constant 0 : index
    %c0_25 = arith.constant 0 : index
    %49 = vector.load %arg10[%c0_24, %c0_25] : memref<32x1xf32, #tpu.memory_space<vmem>>, vector<32x1xf32>
    %50 = vector.broadcast %49 : vector<32x1xf32> to vector<32x128xf32>
    %51 = arith.addf %48, %50 : vector<32x128xf32>
    %cst_26 = arith.constant 0.000000e+00 : f32
    %52 = vector.broadcast %cst_26 : f32 to vector<32x128xf32>
    %53 = arith.maximumf %51, %52 : vector<32x128xf32>
    %54 = arith.truncf %53 : vector<32x128xf32> to vector<32x128xbf16>
    %c0_27 = arith.constant 0 : index
    %c0_28 = arith.constant 0 : index
    %55 = vector.load %arg11[%c0_27, %c0_28] : memref<32x32xbf16, #tpu.memory_space<vmem>>, vector<32x32xbf16>
    %cst_29 = arith.constant dense<0.000000e+00> : vector<32x128xf32>
    %56 = tpu.matmul %55, %54, %cst_29 {dimension_numbers = #tpu.dot_dimension_numbers<[1], [0], [0], [1], [0, 0, 1, 1], [], []>} : vector<32x32xbf16>, vector<32x128xbf16>, vector<32x128xf32> -> vector<32x128xf32>
    %c0_30 = arith.constant 0 : index
    %c0_31 = arith.constant 0 : index
    %57 = vector.load %arg12[%c0_30, %c0_31] : memref<32x1xf32, #tpu.memory_space<vmem>>, vector<32x1xf32>
    %58 = vector.broadcast %57 : vector<32x1xf32> to vector<32x128xf32>
    %59 = arith.addf %56, %58 : vector<32x128xf32>
    %cst_32 = arith.constant 0.000000e+00 : f32
    %60 = vector.broadcast %cst_32 : f32 to vector<32x128xf32>
    %61 = arith.maximumf %59, %60 : vector<32x128xf32>
    %c0_33 = arith.constant 0 : index
    %c0_34 = arith.constant 0 : index
    %62 = vector.load %arg13[%c0_33, %c0_34] : memref<32x1xf32, #tpu.memory_space<vmem>>, vector<32x1xf32>
    %63 = vector.broadcast %62 : vector<32x1xf32> to vector<32x128xf32>
    %64 = arith.mulf %61, %63 : vector<32x128xf32>
    %cst_35 = arith.constant dense<0.000000e+00> : vector<128xf32>
    %65 = vector.multi_reduction <add>, %64, %cst_35 [0] : vector<32x128xf32> to vector<128xf32>
    %66 = vector.shape_cast %65 : vector<128xf32> to vector<1x128xf32>
    %c0_36 = arith.constant 0 : index
    %67 = memref.load %arg14[%c0_36] : memref<1xf32, #tpu.memory_space<smem>>
    %68 = vector.broadcast %67 : f32 to vector<1x128xf32>
    %69 = arith.addf %66, %68 : vector<1x128xf32>
    %c0_37 = arith.constant 0 : index
    %c0_38 = arith.constant 0 : index
    %70 = vector.load %arg15[%c0_37, %c0_38] : memref<1x128xf32, #tpu.memory_space<vmem>>, vector<1x128xf32>
    tpu.vector_store %arg15[%c0_37, %c0_38], %69 {strides = array<i32>} : memref<1x128xf32, #tpu.memory_space<vmem>>, vector<1x128xf32>,
    return
  }
  func.func @transform_0(%arg0: i32) -> (i32, i32) {
    %c0_i32 = arith.constant 0 : i32
    %c0_i32_0 = arith.constant 0 : i32
    return %c0_i32, %arg0 : i32, i32
  }
  func.func @transform_1(%arg0: i32) -> (i32, i32) {
    %c0_i32 = arith.constant 0 : i32
    %c0_i32_0 = arith.constant 0 : i32
    return %c0_i32, %arg0 : i32, i32
  }
  func.func @transform_2(%arg0: i32) -> (i32, i32) {
    %c0_i32 = arith.constant 0 : i32
    %c0_i32_0 = arith.constant 0 : i32
    %c0_i32_1 = arith.constant 0 : i32
    return %c0_i32, %c0_i32_0 : i32, i32
  }
  func.func @transform_3(%arg0: i32) -> (i32, i32) {
    %c0_i32 = arith.constant 0 : i32
    %c0_i32_0 = arith.constant 0 : i32
    %c0_i32_1 = arith.constant 0 : i32
    return %c0_i32, %c0_i32_0 : i32, i32
  }
  func.func @transform_4(%arg0: i32) -> (i32, i32) {
    %c0_i32 = arith.constant 0 : i32
    %c0_i32_0 = arith.constant 0 : i32
    %c0_i32_1 = arith.constant 0 : i32
    return %c0_i32, %c0_i32_0 : i32, i32
  }
  func.func @transform_5(%arg0: i32) -> (i32, i32) {
    %c0_i32 = arith.constant 0 : i32
    %c0_i32_0 = arith.constant 0 : i32
    %c0_i32_1 = arith.constant 0 : i32
    return %c0_i32, %c0_i32_0 : i32, i32
  }
  func.func @transform_6(%arg0: i32) -> (i32, i32) {
    %c0_i32 = arith.constant 0 : i32
    %c0_i32_0 = arith.constant 0 : i32
    %c0_i32_1 = arith.constant 0 : i32
    return %c0_i32, %c0_i32_0 : i32, i32
  }
  func.func @transform_7(%arg0: i32) -> (i32, i32) {
    %c0_i32 = arith.constant 0 : i32
    %c0_i32_0 = arith.constant 0 : i32
    %c0_i32_1 = arith.constant 0 : i32
    return %c0_i32, %c0_i32_0 : i32, i32
  }
  func.func @transform_8(%arg0: i32) -> (i32, i32) {
    %c0_i32 = arith.constant 0 : i32
    %c0_i32_0 = arith.constant 0 : i32
    %c0_i32_1 = arith.constant 0 : i32
    return %c0_i32, %c0_i32_0 : i32, i32
  }
  func.func @transform_9(%arg0: i32) -> (i32, i32) {
    %c0_i32 = arith.constant 0 : i32
    %c0_i32_0 = arith.constant 0 : i32
    %c0_i32_1 = arith.constant 0 : i32
    return %c0_i32, %c0_i32_0 : i32, i32
  }
  func.func @transform_10(%arg0: i32) -> (i32, i32) {
    %c0_i32 = arith.constant 0 : i32
    %c0_i32_0 = arith.constant 0 : i32
    %c0_i32_1 = arith.constant 0 : i32
    return %c0_i32, %c0_i32_0 : i32, i32
  }
  func.func @transform_11(%arg0: i32) -> (i32, i32) {
    %c0_i32 = arith.constant 0 : i32
    %c0_i32_0 = arith.constant 0 : i32
    %c0_i32_1 = arith.constant 0 : i32
    return %c0_i32, %c0_i32_0 : i32, i32
  }
  func.func @transform_12(%arg0: i32) -> (i32, i32) {
    %c0_i32 = arith.constant 0 : i32
    %c0_i32_0 = arith.constant 0 : i32
    %c0_i32_1 = arith.constant 0 : i32
    return %c0_i32, %c0_i32_0 : i32, i32
  }
  func.func @transform_13(%arg0: i32) -> i32 {
    %c0_i32 = arith.constant 0 : i32
    %c0_i32_0 = arith.constant 0 : i32
    return %c0_i32 : i32
  }
  func.func @transform_14(%arg0: i32) -> (i32, i32) {
    %c0_i32 = arith.constant 0 : i32
    %c0_i32_0 = arith.constant 0 : i32
    return %c0_i32, %arg0 : i32, i32
  }
}

</mosaic_0001>

<llo_original>
// kernel: tpu_custom_call.1
$region0: #{tpu_custom_call.1}
  #allocation0 [shape = 'u32[]', space=smem, size = 0x4, offset = 0x4, fixed_abs, tag = 'smem constant byte address 0x4 - core index']
  #allocation1 [shape = 'u32[144,128]{1,0:T(1,128)}', space=vmem, size = 0x12000, scoped, tag = 'internal scratch']
  #allocation2 [shape = 'f32[1]{0:T(128)S(6)}', space=smem, size = 0x200, scoped, tag = 'scoped memory for tpu_custom_call.1']
  %s0 = inlined_call_operand.vmem [shape: bf16[32,128], index: 0, kind: input, shape index: {}]
  %s1 = inlined_call_operand.vmem [shape: f32[4,128], index: 1, kind: input, shape index: {}]
  %s2 = inlined_call_operand.vmem [shape: f32[32,1], index: 2, kind: input, shape index: {}]
  %s3 = inlined_call_operand.vmem [shape: bf16[32,32], index: 3, kind: input, shape index: {}]
  %s4 = inlined_call_operand.vmem [shape: f32[32,1], index: 4, kind: input, shape index: {}]
  %s5 = inlined_call_operand.vmem [shape: bf16[32,32], index: 5, kind: input, shape index: {}]
  %s6 = inlined_call_operand.vmem [shape: f32[32,4], index: 6, kind: input, shape index: {}]
  %s7 = inlined_call_operand.vmem [shape: f32[32,1], index: 7, kind: input, shape index: {}]
  %s8 = inlined_call_operand.vmem [shape: bf16[32,32], index: 8, kind: input, shape index: {}]
  %s9 = inlined_call_operand.vmem [shape: f32[32,1], index: 9, kind: input, shape index: {}]
  %s10 = inlined_call_operand.vmem [shape: bf16[32,32], index: 10, kind: input, shape index: {}]
  %s11 = inlined_call_operand.vmem [shape: f32[32,1], index: 11, kind: input, shape index: {}]
  %s12 = inlined_call_operand.vmem [shape: f32[32,1], index: 12, kind: input, shape index: {}]
  %s13 = inlined_call_operand.<no memory space> [shape: f32[1], index: 13, kind: input, shape index: {}]
  %s14 = inlined_call_operand.hbm [shape: f32[1,128], index: 14, kind: output, shape index: {}]
  %s15 = sld [smem:[#allocation0]]
  $region66: #{tpu_custom_call.1} parent=0
    _
  %s17 = ssub.s32 1, %s15
  %s18 = scalar_select 0, %s17, %s15
  %19 = sst [smem:[#allocation2]] %s13
  $region1: #{tpu_custom_call.1} parent=0
    #allocation3 [shape = 'u8[512]{0}', space=vmem, size = 0x400, scoped, tag = 'output window, operand 0, single buffered']
    #allocation4 [shape = 's32[1]{0}', space=sflag, size = 0x4, scoped, tag = 'scoped memory for tpu_custom_call.1']
    %20 = vsyncpa [#allocation4], 0
    // Predicated region
    $region2: #{tpu_custom_call.1} parent=1 // pred_check
      _
    $region3: #{tpu_custom_call.1} parent=1 // pred_check_branch
      %22 = sbr.rel (0) target = $region5
    $region4: #{tpu_custom_call.1} parent=1 // pred_region
      _
    $region5: #{tpu_custom_call.1} parent=1 // pred_fallthru
      _
    // Predicated region
    $region6: #{tpu_custom_call.1} parent=1 // pred_check
      _
    $region7: #{tpu_custom_call.1} parent=1 // pred_check_branch
      %24 = sbr.rel (0) target = $region9
    $region8: #{tpu_custom_call.1} parent=1 // pred_region
      _
    $region9: #{tpu_custom_call.1} parent=1 // pred_fallthru
      _
    // Predicated region
    $region10: #{tpu_custom_call.1} parent=1 // pred_check
      _
    $region11: #{tpu_custom_call.1} parent=1 // pred_check_branch
      %26 = sbr.rel (0) target = $region13
    $region12: #{tpu_custom_call.1} parent=1 // pred_region
      _
    $region13: #{tpu_custom_call.1} parent=1 // pred_fallthru
      _
    // Predicated region
    $region14: #{tpu_custom_call.1} parent=1 // pred_check
      _
    $region15: #{tpu_custom_call.1} parent=1 // pred_check_branch
      %28 = sbr.rel (0) target = $region17
    $region16: #{tpu_custom_call.1} parent=1 // pred_region
      _
    $region17: #{tpu_custom_call.1} parent=1 // pred_fallthru
      _
    // Predicated region
    $region18: #{tpu_custom_call.1} parent=1 // pred_check
      _
    $region19: #{tpu_custom_call.1} parent=1 // pred_check_branch
      %30 = sbr.rel (0) target = $region21
    $region20: #{tpu_custom_call.1} parent=1 // pred_region
      _
    $region21: #{tpu_custom_call.1} parent=1 // pred_fallthru
      _
    // Predicated region
    $region22: #{tpu_custom_call.1} parent=1 // pred_check
      _
    $region23: #{tpu_custom_call.1} parent=1 // pred_check_branch
      %32 = sbr.rel (0) target = $region25
    $region24: #{tpu_custom_call.1} parent=1 // pred_region
      _
    $region25: #{tpu_custom_call.1} parent=1 // pred_fallthru
      _
    // Predicated region
    $region26: #{tpu_custom_call.1} parent=1 // pred_check
      _
    $region27: #{tpu_custom_call.1} parent=1 // pred_check_branch
      %34 = sbr.rel (0) target = $region29
    $region28: #{tpu_custom_call.1} parent=1 // pred_region
      _
    $region29: #{tpu_custom_call.1} parent=1 // pred_fallthru
      _
    // Predicated region
    $region30: #{tpu_custom_call.1} parent=1 // pred_check
      _
    $region31: #{tpu_custom_call.1} parent=1 // pred_check_branch
      %36 = sbr.rel (0) target = $region33
    $region32: #{tpu_custom_call.1} parent=1 // pred_region
      _
    $region33: #{tpu_custom_call.1} parent=1 // pred_fallthru
      _
    // Predicated region
    $region34: #{tpu_custom_call.1} parent=1 // pred_check
      _
    $region35: #{tpu_custom_call.1} parent=1 // pred_check_branch
      %38 = sbr.rel (0) target = $region37
    $region36: #{tpu_custom_call.1} parent=1 // pred_region
      _
    $region37: #{tpu_custom_call.1} parent=1 // pred_fallthru
      _
    // Predicated region
    $region38: #{tpu_custom_call.1} parent=1 // pred_check
      _
    $region39: #{tpu_custom_call.1} parent=1 // pred_check_branch
      %40 = sbr.rel (0) target = $region41
    $region40: #{tpu_custom_call.1} parent=1 // pred_region
      _
    $region41: #{tpu_custom_call.1} parent=1 // pred_fallthru
      _
    // Predicated region
    $region42: #{tpu_custom_call.1} parent=1 // pred_check
      _
    $region43: #{tpu_custom_call.1} parent=1 // pred_check_branch
      %42 = sbr.rel (0) target = $region45
    $region44: #{tpu_custom_call.1} parent=1 // pred_region
      _
    $region45: #{tpu_custom_call.1} parent=1 // pred_fallthru
      _
    // Predicated region
    $region46: #{tpu_custom_call.1} parent=1 // pred_check
      _
    $region47: #{tpu_custom_call.1} parent=1 // pred_check_branch
      %44 = sbr.rel (0) target = $region49
    $region48: #{tpu_custom_call.1} parent=1 // pred_region
      _
    $region49: #{tpu_custom_call.1} parent=1 // pred_fallthru
      _
    // Predicated region
    $region50: #{tpu_custom_call.1} parent=1 // pred_check
      _
    $region51: #{tpu_custom_call.1} parent=1 // pred_check_branch
      %46 = sbr.rel (0) target = $region53
    $region52: #{tpu_custom_call.1} parent=1 // pred_region
      _
    $region53: #{tpu_custom_call.1} parent=1 // pred_fallthru
      _
    // Predicated region
    $region54: #{tpu_custom_call.1} parent=1 // pred_check
      _
    $region55: #{tpu_custom_call.1} parent=1 // pred_check_branch
      %48 = sbr.rel (0) target = $region57
    $region56: #{tpu_custom_call.1} parent=1 // pred_region
      _
    $region57: #{tpu_custom_call.1} parent=1 // pred_fallthru
      _
    %v50 = vld [vmem:[%s0] sm:$0xf]
    %v51 = vld [vmem:[%s0 + $0x4] sm:$0xf]
    %v52 = vld [vmem:[%s0 + $0x8] sm:$0xf]
    %v53 = vld [vmem:[%s0 + $0xc] sm:$0xf]
    %v54 = vld [vmem:[%s2] sm:$0xff]
    %v55 = vld [vmem:[%s2 + $0x8] sm:$0xff]
    %v56 = vld [vmem:[%s2 + $0x10] sm:$0xff]
    %v57 = vld [vmem:[%s2 + $0x18] sm:$0xff]
    %v58 = vunpack.c.l.bf16 %v50
    %v59 = vunpack.c.l.bf16 %v51
    %v60 = vunpack.c.l.bf16 %v52
    %v61 = vunpack.c.l.bf16 %v53
    %63 = vset.pattern.permute.xlu0 0
    %64 = vperm.xlu0 %63, %v54
    %v65 = vpop.permute.xlu0 %64
    %68 = vset.pattern.permute.xlu0 0
    %69 = vperm.xlu0 %68, %v55
    %v70 = vpop.permute.xlu0 %69
    %73 = vset.pattern.permute.xlu0 0
    %74 = vperm.xlu0 %73, %v56
    %v75 = vpop.permute.xlu0 %74
    %78 = vset.pattern.permute.xlu0 0
    %79 = vperm.xlu0 %78, %v57
    %v80 = vpop.permute.xlu0 %79
    %v82 = vadd.f32 %v58, %v65
    %v83 = vadd.f32 %v59, %v70
    %v84 = vadd.f32 %v60, %v75
    %v85 = vadd.f32 %v61, %v80
    %v86 = vmax.f32 %v82, 0.0
    %v87 = vmax.f32 %v83, 0.0
    %v88 = vmax.f32 %v84, 0.0
    %v89 = vmax.f32 %v85, 0.0
    %v90 = vpack.c.bf16 %v87, %v86
    %v91 = vpack.c.bf16 %v89, %v88
    %v92 = vld [vmem:[%s3] sm:$0xf]
    %v93 = vld [vmem:[%s3 + $0x4] sm:$0xf]
    %v94 = vld [vmem:[%s3 + $0x8] sm:$0xf]
    %v95 = vld [vmem:[%s3 + $0xc] sm:$0xf]
    %v96 = vld [vmem:[%s4] sm:$0xff]
    %v97 = vld [vmem:[%s4 + $0x8] sm:$0xff]
    %v98 = vld [vmem:[%s4 + $0x10] sm:$0xff]
    %v99 = vld [vmem:[%s4 + $0x18] sm:$0xff]
    %101 = vset.pattern.permute.xlu0 0
    %102 = vperm.xlu0 %101, %v96
    %v103 = vpop.permute.xlu0 %102
    %106 = vset.pattern.permute.xlu0 0
    %107 = vperm.xlu0 %106, %v97
    %v108 = vpop.permute.xlu0 %107
    %111 = vset.pattern.permute.xlu0 0
    %112 = vperm.xlu0 %111, %v98
    %v113 = vpop.permute.xlu0 %112
    %116 = vset.pattern.permute.xlu0 0
    %117 = vperm.xlu0 %116, %v99
    %v118 = vpop.permute.xlu0 %117
    %v124 = vunpack.c.l.b16 %v92
    %v125 = vunpack.c.l.b16 %v93
    %v126 = vunpack.c.l.b16 %v94
    %v127 = vunpack.c.l.b16 %v95
    %v128 = vpack.c.b16 %v125, %v124
    %v129 = vpack.c.b16 %v127, %v126
    %vm130 = vcmask 261120
    %v132 = vsel %vm130, %v128, 0
    %v135 = vsel %vm130, %v129, 0
    %137 = vmatprep.subr.bf16.mxu0 0
    %138 = vmatpush1.bf16.msra.mxu0 %v90
    %139 = vmatprep.subr.bf16.mxu0 0
    %140 = vmatpush1.bf16.msra.mxu0 %v91
    %141 = vmatprep.subr.bf16.mxu0 0
    %142 = vmatpush1.bf16.msra.mxu0 0
    %143 = vmatprep.subr.bf16.mxu0 0
    %144 = vmatpush1.bf16.msra.mxu0 0
    %145 = vmatprep.subr.bf16.mxu0 0
    %146 = vmatpush1.bf16.msra.mxu0 0
    %147 = vmatprep.subr.bf16.mxu0 0
    %148 = vmatpush1.bf16.msra.mxu0 0
    %149 = vmatprep.subr.bf16.mxu0 0
    %150 = vmatpush1.bf16.msra.mxu0 0
    %151 = vmatprep.subr.bf16.mxu0 0
    %152 = vmatpush1.bf16.msra.mxu0 0
    %153 = vmatprep.subr.bf16.mxu0 0
    %154 = vmatpush1.bf16.msra.mxu0 0
    %155 = vmatprep.subr.bf16.mxu0 0
    %156 = vmatpush1.bf16.msra.mxu0 0
    %157 = vmatprep.subr.bf16.mxu0 0
    %158 = vmatpush1.bf16.msra.mxu0 0
    %159 = vmatprep.subr.bf16.mxu0 0
    %160 = vmatpush1.bf16.msra.mxu0 0
    %161 = vmatprep.subr.bf16.mxu0 0
    %162 = vmatpush1.bf16.msra.mxu0 0
    %163 = vmatprep.subr.bf16.mxu0 0
    %164 = vmatpush1.bf16.msra.mxu0 0
    %165 = vmatprep.subr.bf16.mxu0 0
    %166 = vmatpush1.bf16.msra.mxu0 0
    %167 = vmatprep.subr.bf16.mxu0 0
    %168 = vmatpush1.bf16.msra.mxu0 0
    %169 = vmatprep.mubr.bf16.mxu0 0
    %170 = vmatmul.mubr.bf16.gmra.mrb[0].mxu0 %v132
    %v171 = vpop.f32.mrb[0].mxu0
    %v172 = vadd.f32 %v103, %v171
    %v173 = vpop.f32.mrb[0].mxu0
    %v174 = vpop.f32.mrb[0].mxu0
    %v175 = vadd.f32 %v108, %v174
    %v176 = vpop.f32.mrb[0].mxu0
    %177 = vmatprep.mubr.bf16.mxu0 0
    %178 = vmatmul.mubr.bf16.gmra.mrb[0].mxu0 %v135
    %v179 = vpop.f32.mrb[0].mxu0
    %v180 = vadd.f32 %v113, %v179
    %v181 = vpop.f32.mrb[0].mxu0
    %v182 = vpop.f32.mrb[0].mxu0
    %v183 = vadd.f32 %v118, %v182
    %v184 = vpop.f32.mrb[0].mxu0
    %185 = vdwg.mxu0
    %v186 = vpack.c.bf16 %v175, %v172
    %v187 = vpack.c.bf16 %v183, %v180
    %v188 = vld [vmem:[%s5] sm:$0xf]
    %v189 = vld [vmem:[%s5 + $0x4] sm:$0xf]
    %v190 = vld [vmem:[%s5 + $0x8] sm:$0xf]
    %v191 = vld [vmem:[%s5 + $0xc] sm:$0xf]
    %v192 = vld [vmem:[%s7] sm:$0xff]
    %v193 = vld [vmem:[%s7 + $0x8] sm:$0xff]
    %v194 = vld [vmem:[%s7 + $0x10] sm:$0xff]
    %v195 = vld [vmem:[%s7 + $0x18] sm:$0xff]
    %197 = vset.pattern.permute.xlu0 0
    %198 = vperm.xlu0 %197, %v192
    %v199 = vpop.permute.xlu0 %198
    %202 = vset.pattern.permute.xlu0 0
    %203 = vperm.xlu0 %202, %v193
    %v204 = vpop.permute.xlu0 %203
    %207 = vset.pattern.permute.xlu0 0
    %208 = vperm.xlu0 %207, %v194
    %v209 = vpop.permute.xlu0 %208
    %212 = vset.pattern.permute.xlu0 0
    %213 = vperm.xlu0 %212, %v195
    %v214 = vpop.permute.xlu0 %213
    %v220 = vunpack.c.l.b16 %v188
    %v221 = vunpack.c.l.b16 %v189
    %v222 = vunpack.c.l.b16 %v190
    %v223 = vunpack.c.l.b16 %v191
    %v224 = vpack.c.b16 %v221, %v220
    %v225 = vpack.c.b16 %v223, %v222
    %v227 = vsel %vm130, %v224, 0
    %v230 = vsel %vm130, %v225, 0
    %232 = vmatprep.subr.bf16.mxu0 0
    %233 = vmatpush1.bf16.msra.mxu0 %v186
    %234 = vmatprep.subr.bf16.mxu0 0
    %235 = vmatpush1.bf16.msra.mxu0 %v187
    %236 = vmatprep.subr.bf16.mxu0 0
    %237 = vmatpush1.bf16.msra.mxu0 0
    %238 = vmatprep.subr.bf16.mxu0 0
    %239 = vmatpush1.bf16.msra.mxu0 0
    %240 = vmatprep.subr.bf16.mxu0 0
    %241 = vmatpush1.bf16.msra.mxu0 0
    %242 = vmatprep.subr.bf16.mxu0 0
    %243 = vmatpush1.bf16.msra.mxu0 0
    %244 = vmatprep.subr.bf16.mxu0 0
    %245 = vmatpush1.bf16.msra.mxu0 0
    %246 = vmatprep.subr.bf16.mxu0 0
    %247 = vmatpush1.bf16.msra.mxu0 0
    %248 = vmatprep.subr.bf16.mxu0 0
    %249 = vmatpush1.bf16.msra.mxu0 0
    %250 = vmatprep.subr.bf16.mxu0 0
    %251 = vmatpush1.bf16.msra.mxu0 0
    %252 = vmatprep.subr.bf16.mxu0 0
    %253 = vmatpush1.bf16.msra.mxu0 0
    %254 = vmatprep.subr.bf16.mxu0 0
    %255 = vmatpush1.bf16.msra.mxu0 0
    %256 = vmatprep.subr.bf16.mxu0 0
    %257 = vmatpush1.bf16.msra.mxu0 0
    %258 = vmatprep.subr.bf16.mxu0 0
    %259 = vmatpush1.bf16.msra.mxu0 0
    %260 = vmatprep.subr.bf16.mxu0 0
    %261 = vmatpush1.bf16.msra.mxu0 0
    %262 = vmatprep.subr.bf16.mxu0 0
    %263 = vmatpush1.bf16.msra.mxu0 0
    %264 = vmatprep.mubr.bf16.mxu0 0
    %265 = vmatmul.mubr.bf16.gmra.mrb[0].mxu0 %v227
    %v266 = vpop.f32.mrb[0].mxu0
    %v267 = vadd.f32 %v199, %v266
    %v268 = vpop.f32.mrb[0].mxu0
    %v269 = vpop.f32.mrb[0].mxu0
    %v270 = vadd.f32 %v204, %v269
    %v271 = vpop.f32.mrb[0].mxu0
    %272 = vmatprep.mubr.bf16.mxu0 0
    %273 = vmatmul.mubr.bf16.gmra.mrb[0].mxu0 %v230
    %v274 = vpop.f32.mrb[0].mxu0
    %v275 = vadd.f32 %v209, %v274
    %v276 = vpop.f32.mrb[0].mxu0
    %v277 = vpop.f32.mrb[0].mxu0
    %v278 = vadd.f32 %v214, %v277
    %v279 = vpop.f32.mrb[0].mxu0
    %280 = vdwg.mxu0
    %v281 = vld [vmem:[%s1] sm:$0xf]
    %v282 = vld [vmem:[%s6] sm:$0xff]
    %v283 = vld [vmem:[%s6 + $0x8] sm:$0xff]
    %v284 = vld [vmem:[%s6 + $0x10] sm:$0xff]
    %v285 = vld [vmem:[%s6 + $0x18] sm:$0xff]
    %287 = vset.pattern.permute.xlu0 0
    %288 = vperm.xlu0 %287, %v282
    %v289 = vpop.permute.xlu0 %288
    %292 = vset.pattern.permute.xlu0 0
    %293 = vperm.xlu0 %292, %v283
    %v294 = vpop.permute.xlu0 %293
    %297 = vset.pattern.permute.xlu0 0
    %298 = vperm.xlu0 %297, %v284
    %v299 = vpop.permute.xlu0 %298
    %302 = vset.pattern.permute.xlu0 0
    %303 = vperm.xlu0 %302, %v285
    %v304 = vpop.permute.xlu0 %303
    %v306 = vlaneseq
    %v307 = vshrl.u32 %v306, 7
    %v308 = vsub.s32 0, %v307
    %v309 = vrot.slane %v281, %v308
    %v310 = vmul.f32 %v289, %v309
    %v311 = vmul.f32 %v294, %v309
    %v312 = vmul.f32 %v299, %v309
    %v313 = vmul.f32 %v304, %v309
    %v314 = vadd.f32 %v267, %v310
    %v315 = vadd.f32 %v270, %v311
    %v316 = vadd.f32 %v275, %v312
    %v317 = vadd.f32 %v278, %v313
    %318 = vset.pattern.permute.xlu0 1
    %319 = vperm.xlu0 %318, %v282
    %v320 = vpop.permute.xlu0 %319
    %322 = vset.pattern.permute.xlu0 1
    %323 = vperm.xlu0 %322, %v283
    %v324 = vpop.permute.xlu0 %323
    %326 = vset.pattern.permute.xlu0 1
    %327 = vperm.xlu0 %326, %v284
    %v328 = vpop.permute.xlu0 %327
    %330 = vset.pattern.permute.xlu0 1
    %331 = vperm.xlu0 %330, %v285
    %v332 = vpop.permute.xlu0 %331
    %v334 = vlaneseq
    %v335 = vshrl.u32 %v334, 7
    %v336 = vsub.s32 1, %v335
    %v337 = vrot.slane %v281, %v336
    %v338 = vmul.f32 %v320, %v337
    %v339 = vmul.f32 %v324, %v337
    %v340 = vmul.f32 %v328, %v337
    %v341 = vmul.f32 %v332, %v337
    %v342 = vadd.f32 %v314, %v338
    %v343 = vadd.f32 %v315, %v339
    %v344 = vadd.f32 %v316, %v340
    %v345 = vadd.f32 %v317, %v341
    %346 = vset.pattern.permute.xlu0 2
    %347 = vperm.xlu0 %346, %v282
    %v348 = vpop.permute.xlu0 %347
    %350 = vset.pattern.permute.xlu0 2
    %351 = vperm.xlu0 %350, %v283
    %v352 = vpop.permute.xlu0 %351
    %354 = vset.pattern.permute.xlu0 2
    %355 = vperm.xlu0 %354, %v284
    %v356 = vpop.permute.xlu0 %355
    %358 = vset.pattern.permute.xlu0 2
    %359 = vperm.xlu0 %358, %v285
    %v360 = vpop.permute.xlu0 %359
    %v362 = vlaneseq
    %v363 = vshrl.u32 %v362, 7
    %v364 = vsub.s32 2, %v363
    %v365 = vrot.slane %v281, %v364
    %v366 = vmul.f32 %v348, %v365
    %v367 = vmul.f32 %v352, %v365
    %v368 = vmul.f32 %v356, %v365
    %v369 = vmul.f32 %v360, %v365
    %v370 = vadd.f32 %v342, %v366
    %v371 = vadd.f32 %v343, %v367
    %v372 = vadd.f32 %v344, %v368
    %v373 = vadd.f32 %v345, %v369
    %374 = vset.pattern.permute.xlu0 3
    %375 = vperm.xlu0 %374, %v282
    %v376 = vpop.permute.xlu0 %375
    %378 = vset.pattern.permute.xlu0 3
    %379 = vperm.xlu0 %378, %v283
    %v380 = vpop.permute.xlu0 %379
    %382 = vset.pattern.permute.xlu0 3
    %383 = vperm.xlu0 %382, %v284
    %v384 = vpop.permute.xlu0 %383
    %386 = vset.pattern.permute.xlu0 3
    %387 = vperm.xlu0 %386, %v285
    %v388 = vpop.permute.xlu0 %387
    %v390 = vlaneseq
    %v391 = vshrl.u32 %v390, 7
    %v392 = vsub.s32 3, %v391
    %v393 = vrot.slane %v281, %v392
    %v394 = vmul.f32 %v376, %v393
    %v395 = vmul.f32 %v380, %v393
    %v396 = vmul.f32 %v384, %v393
    %v397 = vmul.f32 %v388, %v393
    %v398 = vadd.f32 %v370, %v394
    %v399 = vadd.f32 %v371, %v395
    %v400 = vadd.f32 %v372, %v396
    %v401 = vadd.f32 %v373, %v397
    %v402 = vmax.f32 %v398, 0.0
    %v403 = vmax.f32 %v399, 0.0
    %v404 = vmax.f32 %v400, 0.0
    %v405 = vmax.f32 %v401, 0.0
    %v406 = vpack.c.bf16 %v403, %v402
    %v407 = vpack.c.bf16 %v405, %v404
    %v408 = vld [vmem:[%s8] sm:$0xf]
    %v409 = vld [vmem:[%s8 + $0x4] sm:$0xf]
    %v410 = vld [vmem:[%s8 + $0x8] sm:$0xf]
    %v411 = vld [vmem:[%s8 + $0xc] sm:$0xf]
    %v412 = vld [vmem:[%s9] sm:$0xff]
    %v413 = vld [vmem:[%s9 + $0x8] sm:$0xff]
    %v414 = vld [vmem:[%s9 + $0x10] sm:$0xff]
    %v415 = vld [vmem:[%s9 + $0x18] sm:$0xff]
    %417 = vset.pattern.permute.xlu0 0
    %418 = vperm.xlu0 %417, %v412
    %v419 = vpop.permute.xlu0 %418
    %422 = vset.pattern.permute.xlu0 0
    %423 = vperm.xlu0 %422, %v413
    %v424 = vpop.permute.xlu0 %423
    %427 = vset.pattern.permute.xlu0 0
    %428 = vperm.xlu0 %427, %v414
    %v429 = vpop.permute.xlu0 %428
    %432 = vset.pattern.permute.xlu0 0
    %433 = vperm.xlu0 %432, %v415
    %v434 = vpop.permute.xlu0 %433
    %v440 = vunpack.c.l.b16 %v408
    %v441 = vunpack.c.l.b16 %v409
    %v442 = vunpack.c.l.b16 %v410
    %v443 = vunpack.c.l.b16 %v411
    %v444 = vpack.c.b16 %v441, %v440
    %v445 = vpack.c.b16 %v443, %v442
    %v447 = vsel %vm130, %v444, 0
    %v450 = vsel %vm130, %v445, 0
    %452 = vmatprep.subr.bf16.mxu0 0
    %453 = vmatpush1.bf16.msra.mxu0 %v406
    %454 = vmatprep.subr.bf16.mxu0 0
    %455 = vmatpush1.bf16.msra.mxu0 %v407
    %456 = vmatprep.subr.bf16.mxu0 0
    %457 = vmatpush1.bf16.msra.mxu0 0
    %458 = vmatprep.subr.bf16.mxu0 0
    %459 = vmatpush1.bf16.msra.mxu0 0
    %460 = vmatprep.subr.bf16.mxu0 0
    %461 = vmatpush1.bf16.msra.mxu0 0
    %462 = vmatprep.subr.bf16.mxu0 0
    %463 = vmatpush1.bf16.msra.mxu0 0
    %464 = vmatprep.subr.bf16.mxu0 0
    %465 = vmatpush1.bf16.msra.mxu0 0
    %466 = vmatprep.subr.bf16.mxu0 0
    %467 = vmatpush1.bf16.msra.mxu0 0
    %468 = vmatprep.subr.bf16.mxu0 0
    %469 = vmatpush1.bf16.msra.mxu0 0
    %470 = vmatprep.subr.bf16.mxu0 0
    %471 = vmatpush1.bf16.msra.mxu0 0
    %472 = vmatprep.subr.bf16.mxu0 0
    %473 = vmatpush1.bf16.msra.mxu0 0
    %474 = vmatprep.subr.bf16.mxu0 0
    %475 = vmatpush1.bf16.msra.mxu0 0
    %476 = vmatprep.subr.bf16.mxu0 0
    %477 = vmatpush1.bf16.msra.mxu0 0
    %478 = vmatprep.subr.bf16.mxu0 0
    %479 = vmatpush1.bf16.msra.mxu0 0
    %480 = vmatprep.subr.bf16.mxu0 0
    %481 = vmatpush1.bf16.msra.mxu0 0
    %482 = vmatprep.subr.bf16.mxu0 0
    %483 = vmatpush1.bf16.msra.mxu0 0
    %484 = vmatprep.mubr.bf16.mxu0 0
    %485 = vmatmul.mubr.bf16.gmra.mrb[0].mxu0 %v447
    %v486 = vpop.f32.mrb[0].mxu0
    %v487 = vadd.f32 %v419, %v486
    %v488 = vpop.f32.mrb[0].mxu0
    %v489 = vpop.f32.mrb[0].mxu0
    %v490 = vadd.f32 %v424, %v489
    %v491 = vpop.f32.mrb[0].mxu0
    %492 = vmatprep.mubr.bf16.mxu0 0
    %493 = vmatmul.mubr.bf16.gmra.mrb[0].mxu0 %v450
    %v494 = vpop.f32.mrb[0].mxu0
    %v495 = vadd.f32 %v429, %v494
    %v496 = vpop.f32.mrb[0].mxu0
    %v497 = vpop.f32.mrb[0].mxu0
    %v498 = vadd.f32 %v434, %v497
    %v499 = vpop.f32.mrb[0].mxu0
    %500 = vdwg.mxu0
    %v501 = vmax.f32 %v487, 0.0
    %v502 = vmax.f32 %v490, 0.0
    %v503 = vmax.f32 %v495, 0.0
    %v504 = vmax.f32 %v498, 0.0
    %v505 = vpack.c.bf16 %v502, %v501
    %v506 = vpack.c.bf16 %v504, %v503
    %v507 = vld [vmem:[%s10] sm:$0xf]
    %v508 = vld [vmem:[%s10 + $0x4] sm:$0xf]
    %v509 = vld [vmem:[%s10 + $0x8] sm:$0xf]
    %v510 = vld [vmem:[%s10 + $0xc] sm:$0xf]
    %v511 = vld [vmem:[%s11] sm:$0xff]
    %v512 = vld [vmem:[%s11 + $0x8] sm:$0xff]
    %v513 = vld [vmem:[%s11 + $0x10] sm:$0xff]
    %v514 = vld [vmem:[%s11 + $0x18] sm:$0xff]
    %516 = vset.pattern.permute.xlu0 0
    %517 = vperm.xlu0 %516, %v511
    %v518 = vpop.permute.xlu0 %517
    %521 = vset.pattern.permute.xlu0 0
    %522 = vperm.xlu0 %521, %v512
    %v523 = vpop.permute.xlu0 %522
    %526 = vset.pattern.permute.xlu0 0
    %527 = vperm.xlu0 %526, %v513
    %v528 = vpop.permute.xlu0 %527
    %531 = vset.pattern.permute.xlu0 0
    %532 = vperm.xlu0 %531, %v514
    %v533 = vpop.permute.xlu0 %532
    %v539 = vunpack.c.l.b16 %v507
    %v540 = vunpack.c.l.b16 %v508
    %v541 = vunpack.c.l.b16 %v509
    %v542 = vunpack.c.l.b16 %v510
    %v543 = vpack.c.b16 %v540, %v539
    %v544 = vpack.c.b16 %v542, %v541
    %v546 = vsel %vm130, %v543, 0
    %v549 = vsel %vm130, %v544, 0
    %551 = vmatprep.subr.bf16.mxu0 0
    %552 = vmatpush1.bf16.msra.mxu0 %v505
    %553 = vmatprep.subr.bf16.mxu0 0
    %554 = vmatpush1.bf16.msra.mxu0 %v506
    %555 = vmatprep.subr.bf16.mxu0 0
    %556 = vmatpush1.bf16.msra.mxu0 0
    %557 = vmatprep.subr.bf16.mxu0 0
    %558 = vmatpush1.bf16.msra.mxu0 0
    %559 = vmatprep.subr.bf16.mxu0 0
    %560 = vmatpush1.bf16.msra.mxu0 0
    %561 = vmatprep.subr.bf16.mxu0 0
    %562 = vmatpush1.bf16.msra.mxu0 0
    %563 = vmatprep.subr.bf16.mxu0 0
    %564 = vmatpush1.bf16.msra.mxu0 0
    %565 = vmatprep.subr.bf16.mxu0 0
    %566 = vmatpush1.bf16.msra.mxu0 0
    %567 = vmatprep.subr.bf16.mxu0 0
    %568 = vmatpush1.bf16.msra.mxu0 0
    %569 = vmatprep.subr.bf16.mxu0 0
    %570 = vmatpush1.bf16.msra.mxu0 0
    %571 = vmatprep.subr.bf16.mxu0 0
    %572 = vmatpush1.bf16.msra.mxu0 0
    %573 = vmatprep.subr.bf16.mxu0 0
    %574 = vmatpush1.bf16.msra.mxu0 0
    %575 = vmatprep.subr.bf16.mxu0 0
    %576 = vmatpush1.bf16.msra.mxu0 0
    %577 = vmatprep.subr.bf16.mxu0 0
    %578 = vmatpush1.bf16.msra.mxu0 0
    %579 = vmatprep.subr.bf16.mxu0 0
    %580 = vmatpush1.bf16.msra.mxu0 0
    %581 = vmatprep.subr.bf16.mxu0 0
    %582 = vmatpush1.bf16.msra.mxu0 0
    %583 = vmatprep.mubr.bf16.mxu0 0
    %584 = vmatmul.mubr.bf16.gmra.mrb[0].mxu0 %v546
    %v585 = vpop.f32.mrb[0].mxu0
    %v586 = vadd.f32 %v518, %v585
    %v587 = vpop.f32.mrb[0].mxu0
    %v588 = vpop.f32.mrb[0].mxu0
    %v589 = vadd.f32 %v523, %v588
    %v590 = vpop.f32.mrb[0].mxu0
    %591 = vmatprep.mubr.bf16.mxu0 0
    %592 = vmatmul.mubr.bf16.gmra.mrb[0].mxu0 %v549
    %v593 = vpop.f32.mrb[0].mxu0
    %v594 = vadd.f32 %v528, %v593
    %v595 = vpop.f32.mrb[0].mxu0
    %v596 = vpop.f32.mrb[0].mxu0
    %v597 = vadd.f32 %v533, %v596
    %v598 = vpop.f32.mrb[0].mxu0
    %599 = vdwg.mxu0
    %v600 = vmax.f32 %v586, 0.0
    %v601 = vmax.f32 %v589, 0.0
    %v602 = vmax.f32 %v594, 0.0
    %v603 = vmax.f32 %v597, 0.0
    %v604 = vld [vmem:[%s12] sm:$0xff]
    %v605 = vld [vmem:[%s12 + $0x8] sm:$0xff]
    %v606 = vld [vmem:[%s12 + $0x10] sm:$0xff]
    %v607 = vld [vmem:[%s12 + $0x18] sm:$0xff]
    %609 = vset.pattern.permute.xlu0 0
    %610 = vperm.xlu0 %609, %v604
    %v611 = vpop.permute.xlu0 %610
    %614 = vset.pattern.permute.xlu0 0
    %615 = vperm.xlu0 %614, %v605
    %v616 = vpop.permute.xlu0 %615
    %619 = vset.pattern.permute.xlu0 0
    %620 = vperm.xlu0 %619, %v606
    %v621 = vpop.permute.xlu0 %620
    %624 = vset.pattern.permute.xlu0 0
    %625 = vperm.xlu0 %624, %v607
    %v626 = vpop.permute.xlu0 %625
    %v628 = vmul.f32 %v600, %v611
    %v629 = vmul.f32 %v601, %v616
    %v630 = vmul.f32 %v602, %v621
    %v631 = vmul.f32 %v603, %v626
    %v632 = vadd.f32 %v628, %v629
    %v633 = vadd.f32 %v632, %v630
    %v634 = vadd.f32 %v633, %v631
    %v635 = vrot.slane %v634, 4
    %v636 = vadd.f32 %v634, %v635
    %v637 = vrot.slane %v636, 2
    %v638 = vadd.f32 %v636, %v637
    %v639 = vrot.slane %v638, 1
    %v640 = vadd.f32 %v638, %v639
    %s641 = sld [smem:[#allocation2]]
    %v642 = vstv %s641
    %v643 = vadd.f32 %v640, %v642
    %644 = vst [vmem:[#allocation3] sm:$0x1] %v643
    // Predicated region
    $region58: #{tpu_custom_call.1} parent=1 // pred_check
      _
    $region59: #{tpu_custom_call.1} parent=1 // pred_check_branch
      %646 = sbr.rel (0) target = $region61
    $region60: #{tpu_custom_call.1} parent=1 // pred_region
      %s648 = ssub.s32 16, 16
      %649 = vsyncadd [#allocation4], %s648
      %s651 = sshll.u32 [#allocation3], 4
      %s652 = int_to_ptr.vmem [resolvable:$true] %s651
      %654 = dma.vmem_to_hbm [thread:$0]  %s652, 16, %s14, [#allocation4]
    $region61: #{tpu_custom_call.1} parent=1 // pred_fallthru
      _
    // Predicated region
    $region62: #{tpu_custom_call.1} parent=1 // pred_check
      _
    $region63: #{tpu_custom_call.1} parent=1 // pred_check_branch
      %656 = sbr.rel (0) target = $region65
    $region64: #{tpu_custom_call.1} parent=1 // pred_region
      %657 = dma.done [#allocation4], 16
    $region65: #{tpu_custom_call.1} parent=1 // pred_fallthru
      _
    %658 = vsyncpa [#allocation4], 1

</llo_original>
